<compile_context>
chip_gen: v5e
topology: v5e:2x2
jax: 0.10.0
libtpu: 0.0.40
codegen_flags: <defaults>
</compile_context>

<pallas_src>
import jax
import jax.numpy as jnp
from jax.experimental import pallas as pl
from jax.experimental.pallas import tpu as pltpu


def _low_rank_kernel(x_ref, w_ref, c_ref, o_ref):
    x = x_ref[...]                              # (tb, T*N), input dtype
    w = w_ref[...].astype(x.dtype)              # (1, T*N) rank-1 weight
    # multiply in the input dtype, accumulate the lane reduction in f32
    prod = (x * w).astype(jnp.float32)          # (tb, T*N)
    y = jnp.sum(prod, axis=1, keepdims=True)    # (tb, 1)
    o_ref[...] = (y + c_ref[0, 0]).astype(o_ref.dtype)


def _pick_batch_tile(bsz, row_bytes, target_bytes):
    """Rows of x per block: ~target_bytes, multiple of 8 (or the full batch)."""
    if bsz * row_bytes <= target_bytes or bsz <= 8:
        return bsz  # full-dim block — exempt from the 8-sublane rule
    rows = max(8, (target_bytes // max(1, row_bytes)) // 8 * 8)
    return int(min(rows, bsz))


def low_rank_regressor(x, A, B, c, *, target_block_bytes=8 << 20):
    """Pallas TPU implementation of LowRankRegressor.forward.

    x: (..., T, N); A: (rank_t, T); B: (N, rank_n); c: (1,)
    returns sum(A @ x @ B, axis=(-2, -1)) + c  with shape x.shape[:-2]
    (or shape (1,) for an unbatched (T, N) input, matching torch broadcasting).
    """
    rank_t, T = A.shape
    N, rank_n = B.shape
    assert x.shape[-2:] == (T, N), (x.shape, (T, N))
    lead = x.shape[:-2]
    TN = T * N

    # Separable rank-1 weight: w[t, n] = (sum_r A[r, t]) * (sum_k B[n, k]).
    a = jnp.sum(A.astype(jnp.float32), axis=0)           # (T,)
    b = jnp.sum(B.astype(jnp.float32), axis=1)           # (N,)
    w = (a[:, None] * b[None, :]).reshape(1, TN)          # (1, T*N) f32

    # Lane-dense flatten of x: last dim T*N (multiple of 128 at typical sizes).
    xb = x.reshape((-1, TN))
    bsz = xb.shape[0]
    row_bytes = TN * jnp.dtype(xb.dtype).itemsize
    tb = _pick_batch_tile(bsz, row_bytes, target_block_bytes)
    grid = (pl.cdiv(bsz, tb),)

    c2 = jnp.asarray(c, jnp.float32).reshape(1, 1)

    out = pl.pallas_call(
        _low_rank_kernel,
        out_shape=jax.ShapeDtypeStruct((bsz, 1), jnp.float32),
        grid_spec=pltpu.PrefetchScalarGridSpec(
            num_scalar_prefetch=0,
            grid=grid,
            in_specs=[
                pl.BlockSpec((tb, TN), lambda i: (i, 0)),        # x batch tile
                pl.BlockSpec((1, TN), lambda i: (0, 0)),         # rank-1 weight
                pl.BlockSpec((1, 1), lambda i: (0, 0),
                             memory_space=pltpu.MemorySpace.SMEM),  # bias c
            ],
            out_specs=pl.BlockSpec((tb, 1), lambda i: (i, 0)),
        ),
        compiler_params=pltpu.CompilerParams(
            dimension_semantics=("parallel",),
            # ~8 MiB blocks double-buffered -> ~16 MiB; 48 MiB scoped budget
            # is safe on every generation, incl. v7x's 64 MiB per-core VMEM.
            vmem_limit_bytes=48 * 1024 * 1024,
        ),
    )(xb, w, c2)

    y = out[:, 0]
    if lead:
        return y.reshape(lead)
    return y  # unbatched input: shape (1,), like torch's scalar + c(1,)


if __name__ == "__main__":
    key = jax.random.PRNGKey(0)
    kx, ka, kb, kc = jax.random.split(key, 4)

    # Module config: N=32 features, T=16 time steps, rank_n=3, rank_t=4,
    # batch=16 sequences -> lane-dense rows of T*N = 512.
    N, T, rank_n, rank_t = 32, 16, 3, 4
    batch = 16

    A = jax.random.uniform(ka, (rank_t, T), dtype=jnp.float32)   # torch.rand
    B = jax.random.uniform(kb, (N, rank_n), dtype=jnp.float32)
    c = jax.random.uniform(kc, (1,), dtype=jnp.float32)
    x = jax.random.normal(kx, (batch, T, N), dtype=jnp.float32)

    out = low_rank_regressor(x, A, B, c)
    out = jax.block_until_ready(out)

    # Reference: torch.sum(A @ x @ B, dim=[-2, -1]) + c
    ref = jnp.sum(jnp.einsum("rt,btn->brn", A, x) @ B, axis=(-2, -1)) + c[0]
    assert out.shape == (batch,), out.shape
    assert bool(jnp.allclose(out, ref, rtol=1e-4, atol=1e-4)), (out, ref)

    print("KERNEL_OK")
</pallas_src>

<mosaic_0001>
module attributes {stable_mosaic.version = 11 : i64} {
  func.func @_low_rank_kernel(%arg0: i32, %arg1: memref<16x512xf32, #tpu.memory_space<vmem>>, %arg2: memref<1x512xf32, #tpu.memory_space<vmem>>, %arg3: memref<1x1xf32, #tpu.memory_space<smem>>, %arg4: memref<16x1xf32, #tpu.memory_space<vmem>>) attributes {dimension_semantics = [#tpu.dimension_semantics<parallel>], iteration_bounds = array<i64: 1>, scalar_prefetch = 0 : i64, scratch_operands = 0 : i64, tpu.core_type = #tpu.core_type<tc>, window_params = [{transform_indices = @transform_0, window_bounds = array<i64: 16, 512>}, {pipeline_mode = #tpu.pipeline_mode<synchronous>, transform_indices = @transform_1, window_bounds = array<i64: 1, 512>}, {transform_indices = @transform_2, window_bounds = array<i64: 1, 1>}, {transform_indices = @transform_3, window_bounds = array<i64: 16, 1>}]} {
    %c0 = arith.constant 0 : index
    %c0_0 = arith.constant 0 : index
    %0 = vector.load %arg1[%c0, %c0_0] : memref<16x512xf32, #tpu.memory_space<vmem>>, vector<16x512xf32>
    %c0_1 = arith.constant 0 : index
    %c0_2 = arith.constant 0 : index
    %1 = vector.load %arg2[%c0_1, %c0_2] : memref<1x512xf32, #tpu.memory_space<vmem>>, vector<1x512xf32>
    %2 = vector.broadcast %1 : vector<1x512xf32> to vector<16x512xf32>
    %3 = arith.mulf %0, %2 : vector<16x512xf32>
    %cst = arith.constant dense<0.000000e+00> : vector<16xf32>
    %4 = vector.multi_reduction <add>, %3, %cst [1] : vector<16x512xf32> to vector<16xf32>
    %5 = vector.shape_cast %4 : vector<16xf32> to vector<16x1xf32>
    %c0_3 = arith.constant 0 : index
    %c0_4 = arith.constant 0 : index
    %6 = memref.load %arg3[%c0_3, %c0_4] : memref<1x1xf32, #tpu.memory_space<smem>>
    %7 = vector.broadcast %6 : f32 to vector<16x1xf32>
    %8 = arith.addf %5, %7 : vector<16x1xf32>
    %c0_5 = arith.constant 0 : index
    %c0_6 = arith.constant 0 : index
    %9 = vector.load %arg4[%c0_5, %c0_6] : memref<16x1xf32, #tpu.memory_space<vmem>>, vector<16x1xf32>
    tpu.vector_store %arg4[%c0_5, %c0_6], %8 {strides = array<i32>} : memref<16x1xf32, #tpu.memory_space<vmem>>, vector<16x1xf32>,
    return
  }
  func.func @transform_0(%arg0: i32) -> (i32, i32) {
    %c0_i32 = arith.constant 0 : i32
    %c0_i32_0 = arith.constant 0 : i32
    return %arg0, %c0_i32 : i32, i32
  }
  func.func @transform_1(%arg0: i32) -> (i32, i32) {
    %c0_i32 = arith.constant 0 : i32
    %c0_i32_0 = arith.constant 0 : i32
    %c0_i32_1 = arith.constant 0 : i32
    return %c0_i32, %c0_i32_0 : i32, i32
  }
  func.func @transform_2(%arg0: i32) -> (i32, i32) {
    %c0_i32 = arith.constant 0 : i32
    %c0_i32_0 = arith.constant 0 : i32
    %c0_i32_1 = arith.constant 0 : i32
    return %c0_i32, %c0_i32_0 : i32, i32
  }
  func.func @transform_3(%arg0: i32) -> (i32, i32) {
    %c0_i32 = arith.constant 0 : i32
    %c0_i32_0 = arith.constant 0 : i32
    return %arg0, %c0_i32 : i32, i32
  }
}

</mosaic_0001>

<llo_original>
// kernel: tpu_custom_call.1
$region0: #{tpu_custom_call.1}
  #allocation0 [shape = 'u32[]', space=smem, size = 0x4, offset = 0x4, fixed_abs, tag = 'smem constant byte address 0x4 - core index']
  #allocation1 [shape = 'u32[72,128]{1,0:T(1,128)}', space=vmem, size = 0x9000, scoped, tag = 'internal scratch']
  #allocation2 [shape = 'f32[1,1]{1,0:T(1,128)S(6)}', space=smem, size = 0x200, scoped, tag = 'scoped memory for tpu_custom_call.1']
  %s0 = inlined_call_operand.hbm [shape: f32[16,512], index: 0, kind: input, shape index: {}]
  %s1 = inlined_call_operand.hbm [shape: f32[1,512], index: 1, kind: input, shape index: {}]
  %s2 = inlined_call_operand.<no memory space> [shape: f32[1,1], index: 2, kind: input, shape index: {}]
  %s3 = inlined_call_operand.vmem [shape: f32[16,1], index: 3, kind: output, shape index: {}]
  %s4 = sld [smem:[#allocation0]]
  $region30: #{tpu_custom_call.1} parent=0
    _
  %s6 = ssub.s32 1, %s4
  %s7 = scalar_select 0, %s6, %s4
  %8 = sst [smem:[#allocation2]] %s2
  $region1: #{tpu_custom_call.1} parent=0
    #allocation3 [shape = 'u8[32768]{0}', space=vmem, size = 0x8000, scoped, tag = 'input window, operand 0, single buffered']
    #allocation4 [shape = 's32[1]{0}', space=sflag, size = 0x4, scoped, tag = 'scoped memory for tpu_custom_call.1']
    #allocation5 [shape = 'u8[2048]{0}', space=vmem, size = 0x800, scoped, tag = 'input window, operand 1, single buffered']
    #allocation6 [shape = 's32[1]{0}', space=sflag, size = 0x4, scoped, tag = 'scoped memory for tpu_custom_call.1']
    %9 = vsyncpa [#allocation4], 0
    %10 = vsyncpa [#allocation6], 0
    // Predicated region
    $region2: #{tpu_custom_call.1} parent=1 // pred_check
      _
    $region3: #{tpu_custom_call.1} parent=1 // pred_check_branch
      %12 = sbr.rel (0) target = $region5
    $region4: #{tpu_custom_call.1} parent=1 // pred_region
      %14 = vsyncadd [#allocation4], 0
      %s15 = sshll.u32 %s0, 4
      %s16 = int_to_ptr.hbm [resolvable:$true] %s15
      %s17 = sshll.u32 [#allocation3], 4
      %s18 = int_to_ptr.vmem [resolvable:$true] %s17
      %23 = dma.hbm_to_vmem [thread:$0]  %s16, 1024, %s18, [#allocation4], 512, 512, 32
    $region5: #{tpu_custom_call.1} parent=1 // pred_fallthru
      _
    // Predicated region
    $region6: #{tpu_custom_call.1} parent=1 // pred_check
      _
    $region7: #{tpu_custom_call.1} parent=1 // pred_check_branch
      %25 = sbr.rel (0) target = $region9
    $region8: #{tpu_custom_call.1} parent=1 // pred_region
      %27 = vsyncadd [#allocation6], 0
      %s29 = sshll.u32 %s1, 4
      %s30 = int_to_ptr.hbm [resolvable:$true] %s29
      %s31 = sshll.u32 [#allocation5], 4
      %s32 = int_to_ptr.vmem [resolvable:$true] %s31
      %34 = dma.hbm_to_vmem [thread:$0]  %s30, 64, %s32, [#allocation6]
    $region9: #{tpu_custom_call.1} parent=1 // pred_fallthru
      _
    // Predicated region
    $region10: #{tpu_custom_call.1} parent=1 // pred_check
      _
    $region11: #{tpu_custom_call.1} parent=1 // pred_check_branch
      %36 = sbr.rel (0) target = $region13
    $region12: #{tpu_custom_call.1} parent=1 // pred_region
      _
    $region13: #{tpu_custom_call.1} parent=1 // pred_fallthru
      _
    // Predicated region
    $region14: #{tpu_custom_call.1} parent=1 // pred_check
      _
    $region15: #{tpu_custom_call.1} parent=1 // pred_check_branch
      %38 = sbr.rel (0) target = $region17
    $region16: #{tpu_custom_call.1} parent=1 // pred_region
      %40 = dma.done [#allocation4], 1024
    $region17: #{tpu_custom_call.1} parent=1 // pred_fallthru
      _
    // Predicated region
    $region18: #{tpu_custom_call.1} parent=1 // pred_check
      _
    $region19: #{tpu_custom_call.1} parent=1 // pred_check_branch
      %42 = sbr.rel (0) target = $region21
    $region20: #{tpu_custom_call.1} parent=1 // pred_region
      %44 = dma.done [#allocation6], 64
    $region21: #{tpu_custom_call.1} parent=1 // pred_fallthru
      _
    %v45 = vld [vmem:[#allocation3] sm:$0xff]
    %v46 = vld [vmem:[#allocation3 + $0x8] sm:$0xff]
    %v47 = vld [vmem:[#allocation3 + $0x10] sm:$0xff]
    %v48 = vld [vmem:[#allocation3 + $0x18] sm:$0xff]
    %v49 = vld [vmem:[#allocation3 + $0x20] sm:$0xff]
    %v50 = vld [vmem:[#allocation3 + $0x28] sm:$0xff]
    %v51 = vld [vmem:[#allocation3 + $0x30] sm:$0xff]
    %v52 = vld [vmem:[#allocation3 + $0x38] sm:$0xff]
    %v53 = vld [vmem:[#allocation5] sm:$0xf]
    %v55 = vperm.slane %v53, 0
    %v56 = vperm.slane %v53, 1
    %v57 = vperm.slane %v53, 2
    %v58 = vperm.slane %v53, 3
    %v63 = vmul.f32 %v45, %v55
    %v64 = vmul.f32 %v46, %v56
    %v65 = vmul.f32 %v47, %v57
    %v66 = vmul.f32 %v48, %v58
    %v67 = vmul.f32 %v49, %v55
    %v68 = vmul.f32 %v50, %v56
    %v69 = vmul.f32 %v51, %v57
    %v70 = vmul.f32 %v52, %v58
    %v71 = vadd.f32 %v63, %v64
    %v72 = vadd.f32 %v71, %v65
    %v73 = vadd.f32 %v72, %v66
    %74 = vadd.xlane.f32.xlu0 %v73
    %v75 = vpop.xlane.xlu0 %74
    %v76 = vadd.f32 %v67, %v68
    %v77 = vadd.f32 %v76, %v69
    %v78 = vadd.f32 %v77, %v70
    %79 = vadd.xlane.f32.xlu0 %v78
    %v80 = vpop.xlane.xlu0 %79
    %s81 = sld [smem:[#allocation2]]
    %v82 = vstv %s81
    %v83 = vadd.f32 %v75, %v82
    %v84 = vadd.f32 %v80, %v82
    %vm85 = vcmask 7168
    %86 = vst.msk [vmem:[%s3] sm:$0xff] %vm85, %v83
    %87 = vst.msk [vmem:[%s3 + $0x8] sm:$0xff] %vm85, %v84
    // Predicated region
    $region22: #{tpu_custom_call.1} parent=1 // pred_check
      _
    $region23: #{tpu_custom_call.1} parent=1 // pred_check_branch
      %89 = sbr.rel (0) target = $region25
    $region24: #{tpu_custom_call.1} parent=1 // pred_region
      _
    $region25: #{tpu_custom_call.1} parent=1 // pred_fallthru
      _
    // Predicated region
    $region26: #{tpu_custom_call.1} parent=1 // pred_check
      _
    $region27: #{tpu_custom_call.1} parent=1 // pred_check_branch
      %91 = sbr.rel (0) target = $region29
    $region28: #{tpu_custom_call.1} parent=1 // pred_region
      _
    $region29: #{tpu_custom_call.1} parent=1 // pred_fallthru
      _
    %92 = vsyncpa [#allocation4], 1
    %93 = vsyncpa [#allocation6], 1

</llo_original>
